<compile_context>
chip_gen: v7x
topology: tpu7x:2x2x1
jax: 0.10.0
libtpu: 0.0.40
codegen_flags: <defaults>
</compile_context>

<pallas_src>
import jax
import jax.numpy as jnp
from jax.experimental import pallas as pl
from jax.experimental.pallas import tpu as pltpu

# ---- problem sizes (small, consistent with demucs conventions) --------------
B = 2          # batch
C = 2          # audio_channels
T = 256        # time samples (multiple of 128, full-T block => lane-dense out)
S = 4          # number of sources
K = 3          # number of models in the bag
SC = S * C     # stacked (source, channel) output rows
CA = C + 1     # channels + appended ones-row carrying the folded bias


def _bag_kernel(x_ref, w_ref, o_ref):
    """One batch element.

    x_ref : (1, CA, T)  waveform with an appended ones-row (bias carrier)
    w_ref : (SC, CA)    folded bag weights (last column = effective bias)
    o_ref : (1, SC, T)  combined bag estimate
    """
    x = x_ref[0]       # (CA, T)
    w = w_ref[...]     # (SC, CA)
    # Contraction dim CA = 3: three VPU broadcast-FMAs; skips the MXU push /
    # result-FIFO drain a (8,3)@(3,T) matmul would pay for <1% array use.
    acc = w[:, 0:1] * x[0:1, :]              # (SC, T)
    for c in range(1, CA):                   # static, unrolled
        acc = acc + w[:, c:c + 1] * x[c:c + 1, :]
    o_ref[0] = acc.astype(o_ref.dtype)


def bag_of_models_forward(x, model_ws, model_bs, bag_weights):
    """x: (B, C, T) f32; model_ws: (K, SC, C); model_bs: (K, SC);
    bag_weights: (K, S).  Returns (B, S, C, T)."""
    # --- glue: per-source normalization + algebraic fold of the K models ----
    tot = jnp.maximum(jnp.sum(bag_weights, axis=0), 1e-8)      # (S,) guard /0
    mix = bag_weights / tot[None, :]                           # (K, S)
    mix_sc = jnp.repeat(mix, C, axis=1)                        # (K, SC)
    w_eff = jnp.einsum("ko,koc->oc", mix_sc, model_ws)         # (SC, C)
    b_eff = jnp.sum(mix_sc * model_bs, axis=0)                 # (SC,)
    w_aug = jnp.concatenate([w_eff, b_eff[:, None]], axis=1)   # (SC, CA)
    x_aug = jnp.concatenate([x, jnp.ones((B, 1, T), x.dtype)], axis=1)  # (B, CA, T)

    # NOTE(scaling): for realistic demucs T (100k+ samples) reintroduce a time
    # tile TT >= 2048 as a second grid axis and budget VMEM against v7x's
    # 64 MiB via vmem_limit_bytes; at this toy size full-T blocks are optimal.
    out = pl.pallas_call(
        _bag_kernel,
        out_shape=jax.ShapeDtypeStruct((B, SC, T), jnp.float32),
        grid=(B,),
        in_specs=[
            pl.BlockSpec((1, CA, T), lambda b: (b, 0, 0)),     # x (full T)
            pl.BlockSpec((SC, CA), lambda b: (0, 0)),          # folded weights
        ],
        out_specs=pl.BlockSpec((1, SC, T), lambda b: (b, 0, 0)),
        compiler_params=pltpu.CompilerParams(
            dimension_semantics=("parallel",)),                # B across v7x TCs
    )(x_aug, w_aug)

    return out.reshape(B, S, C, T)


def _reference(x, model_ws, model_bs, bag_weights):
    """Pure-JAX reference of the original (un-folded) bag combination rule."""
    tot = jnp.sum(bag_weights, axis=0)                                   # (S,)
    acc = jnp.zeros((B, SC, T), jnp.float32)
    for k in range(K):
        y = jnp.einsum("oc,bct->bot", model_ws[k], x) + model_bs[k][None, :, None]
        w_sc = jnp.repeat(bag_weights[k], C)[None, :, None]
        acc = acc + w_sc * y
    acc = acc / jnp.repeat(tot, C)[None, :, None]
    return acc.reshape(B, S, C, T)


if __name__ == "__main__":
    key = jax.random.PRNGKey(0)
    kx, kw, kb, kbag = jax.random.split(key, 4)

    x = jax.random.normal(kx, (B, C, T), dtype=jnp.float32)
    model_ws = 0.1 * jax.random.normal(kw, (K, SC, C), dtype=jnp.float32)
    model_bs = 0.01 * jax.random.normal(kb, (K, SC), dtype=jnp.float32)
    # default demucs behavior is weights = 1.0 everywhere; use nontrivial
    # positive weights to exercise the per-source normalization.
    bag_weights = jnp.abs(jax.random.normal(kbag, (K, S), dtype=jnp.float32)) + 0.5

    out = bag_of_models_forward(x, model_ws, model_bs, bag_weights)
    out = jax.block_until_ready(out)

    ref = _reference(x, model_ws, model_bs, bag_weights)
    assert out.shape == (B, S, C, T)
    assert jnp.allclose(out, ref, atol=1e-5, rtol=1e-5), "mismatch vs reference"

    # TODO(synk): the real BagOfModels delegates to apply_model (segment
    # chunking, shifts, overlap-add) and arbitrary sub-model internals; those
    # are synthesized here as per-model 1x1 convs over channels.
    print("KERNEL_OK")
</pallas_src>

<mosaic_0001>
module attributes {stable_mosaic.version = 11 : i64} {
  func.func @_bag_kernel(%arg0: i32, %arg1: memref<1x3x256xf32, #tpu.memory_space<vmem>>, %arg2: memref<8x3xf32, #tpu.memory_space<vmem>>, %arg3: memref<1x8x256xf32, #tpu.memory_space<vmem>>) attributes {dimension_semantics = [#tpu.dimension_semantics<parallel>], iteration_bounds = array<i64: 2>, scalar_prefetch = 0 : i64, scratch_operands = 0 : i64, tpu.core_type = #tpu.core_type<tc>, window_params = [{transform_indices = @transform_0, window_bounds = array<i64: 1, 3, 256>}, {pipeline_mode = #tpu.pipeline_mode<synchronous>, transform_indices = @transform_1, window_bounds = array<i64: 8, 3>}, {transform_indices = @transform_2, window_bounds = array<i64: 1, 8, 256>}]} {
    %c0 = arith.constant 0 : index
    %c0_0 = arith.constant 0 : index
    %c0_1 = arith.constant 0 : index
    %0 = vector.load %arg1[%c0, %c0_0, %c0_1] : memref<1x3x256xf32, #tpu.memory_space<vmem>>, vector<1x3x256xf32>
    %1 = vector.shape_cast %0 : vector<1x3x256xf32> to vector<3x256xf32>
    %c0_2 = arith.constant 0 : index
    %c0_3 = arith.constant 0 : index
    %2 = vector.load %arg2[%c0_2, %c0_3] : memref<8x3xf32, #tpu.memory_space<vmem>>, vector<8x3xf32>
    %3 = vector.extract_strided_slice %2 {offsets = [0, 0], sizes = [8, 1], strides = [1, 1]} : vector<8x3xf32> to vector<8x1xf32>
    %4 = vector.extract_strided_slice %1 {offsets = [0, 0], sizes = [1, 256], strides = [1, 1]} : vector<3x256xf32> to vector<1x256xf32>
    %5 = vector.broadcast %3 : vector<8x1xf32> to vector<8x256xf32>
    %6 = vector.broadcast %4 : vector<1x256xf32> to vector<8x256xf32>
    %7 = arith.mulf %5, %6 : vector<8x256xf32>
    %8 = vector.extract_strided_slice %2 {offsets = [0, 1], sizes = [8, 1], strides = [1, 1]} : vector<8x3xf32> to vector<8x1xf32>
    %9 = vector.extract_strided_slice %1 {offsets = [1, 0], sizes = [1, 256], strides = [1, 1]} : vector<3x256xf32> to vector<1x256xf32>
    %10 = vector.broadcast %8 : vector<8x1xf32> to vector<8x256xf32>
    %11 = vector.broadcast %9 : vector<1x256xf32> to vector<8x256xf32>
    %12 = arith.mulf %10, %11 : vector<8x256xf32>
    %13 = arith.addf %7, %12 : vector<8x256xf32>
    %14 = vector.extract_strided_slice %2 {offsets = [0, 2], sizes = [8, 1], strides = [1, 1]} : vector<8x3xf32> to vector<8x1xf32>
    %15 = vector.extract_strided_slice %1 {offsets = [2, 0], sizes = [1, 256], strides = [1, 1]} : vector<3x256xf32> to vector<1x256xf32>
    %16 = vector.broadcast %14 : vector<8x1xf32> to vector<8x256xf32>
    %17 = vector.broadcast %15 : vector<1x256xf32> to vector<8x256xf32>
    %18 = arith.mulf %16, %17 : vector<8x256xf32>
    %19 = arith.addf %13, %18 : vector<8x256xf32>
    %c0_4 = arith.constant 0 : index
    %c0_5 = arith.constant 0 : index
    %c0_6 = arith.constant 0 : index
    %20 = vector.load %arg3[%c0_4, %c0_5, %c0_6] : memref<1x8x256xf32, #tpu.memory_space<vmem>>, vector<1x8x256xf32>
    %21 = vector.shape_cast %20 : vector<1x8x256xf32> to vector<8x256xf32>
    %22 = vector.shape_cast %19 : vector<8x256xf32> to vector<1x8x256xf32>
    tpu.vector_store %arg3[%c0_4, %c0_5, %c0_6], %22 {strides = array<i32>} : memref<1x8x256xf32, #tpu.memory_space<vmem>>, vector<1x8x256xf32>,
    return
  }
  func.func @transform_0(%arg0: i32) -> (i32, i32, i32) {
    %c0_i32 = arith.constant 0 : i32
    %c0_i32_0 = arith.constant 0 : i32
    %c0_i32_1 = arith.constant 0 : i32
    return %arg0, %c0_i32, %c0_i32_0 : i32, i32, i32
  }
  func.func @transform_1(%arg0: i32) -> (i32, i32) {
    %c0_i32 = arith.constant 0 : i32
    %c0_i32_0 = arith.constant 0 : i32
    %c0_i32_1 = arith.constant 0 : i32
    return %c0_i32, %c0_i32_0 : i32, i32
  }
  func.func @transform_2(%arg0: i32) -> (i32, i32, i32) {
    %c0_i32 = arith.constant 0 : i32
    %c0_i32_0 = arith.constant 0 : i32
    %c0_i32_1 = arith.constant 0 : i32
    return %arg0, %c0_i32, %c0_i32_0 : i32, i32, i32
  }
}

</mosaic_0001>

<llo_original>
// kernel: tpu_custom_call.1
$region0: #{tpu_custom_call.1}
  #allocation0 [shape = 'u32[]', space=smem, size = 0x4, offset = 0x4, fixed_abs, tag = 'smem constant byte address 0x4 - core index']
  #allocation1 [shape = 'u32[144,128]{1,0:T(1,128)}', space=vmem, size = 0x12000, scoped, tag = 'internal scratch']
  %s0 = inlined_call_operand.vmem [shape: f32[2,3,256], index: 0, kind: input, shape index: {}]
  %s1 = inlined_call_operand.vmem [shape: f32[8,3], index: 1, kind: input, shape index: {}]
  %s2 = inlined_call_operand.hbm [shape: f32[2,8,256], index: 2, kind: output, shape index: {}]
  %s3 = sld [smem:[#allocation0]]
  $region41: #{tpu_custom_call.1} parent=0
    _
  %s5 = ssub.s32 1, %s3
  %s6 = scalar_select 0, %s5, %s3
  $region1: #{tpu_custom_call.1} parent=0
    #allocation2 [shape = 'u8[16384]{0}', space=vmem, size = 0x4000, scoped, tag = 'output window, operand 0']
    #allocation3 [shape = 's32[2]{0}', space=sflag, size = 0x8, scoped, tag = 'scoped memory for tpu_custom_call.1']
    %7 = vsyncpa [#allocation3], 0
    %s8 = scalar_lea.sflag [#allocation3], 1
    %9 = vsyncpa %s8, 0
    loop: start=0, step=1, limit=4
    $region2: #{tpu_custom_call.1} parent=1 // loop_pre_header
      _
    $region3: #{tpu_custom_call.1} parent=1 // loop_header
      %s11 = sphi 0, %s15
      %p12 = scmp.ge.s32.totalorder %s11, 4
      %s21 = sphi 0, %s23
      %s24 = sphi 0, %s21
      %s25 = sphi 0, %s24
      %s41 = sphi 0, %s25
      %s45 = sphi 0, %s45
      %s47 = sphi 0, %s45
      %s48 = sphi 0, %s47
      %s62 = sphi 0, %s48
      %s68 = sphi 0, %s70
      %s71 = sphi 0, %s68
      %s72 = sphi 0, %s71
      %s88 = sphi 0, %s72
    $region4: #{tpu_custom_call.1} parent=1 // loop_header_branch
      %14 = sbr.rel (%p12) target = $region8
    $region5: #{tpu_custom_call.1} parent=1 // loop_body
      %s16 = ssub.s32 %s11, 1
      %s17 = ssub.s32 %s11, 2
      %s18 = sadd.s32 %s11, 1
      %s19 = ssub.s32 %s11, %s18
      %p20 = scmp.eq.s32.totalorder %s19, 0
      %s22 = sadd.s32 %s21, 1
      %s23 = scalar_select %p20, %s21, %s22
      %p26 = pneg %p20
      %p27 = scmp.eq.s32.totalorder %s11, 1
      %p28 = por %p26, %p27
      %p29 = scmp.ne.s32.totalorder %s21, %s24
      %p30 = scmp.eq.s32.totalorder %s11, 0
      %p31 = por %p29, %p30
      %p32 = scmp.ne.s32.totalorder %s21, %s24
      %p33 = scmp.eq.s32.totalorder %s16, 1
      %p34 = por %p32, %p33
      %p35 = scmp.ne.s32.totalorder %s24, %s25
      %p36 = scmp.eq.s32.totalorder %s16, 0
      %p37 = por %p35, %p36
      %p38 = scmp.ne.s32.totalorder %s24, %s25
      %p39 = scmp.eq.s32.totalorder %s17, 1
      %p40 = por %p38, %p39
      %p42 = scmp.ne.s32.totalorder %s25, %s41
      %p43 = scmp.eq.s32.totalorder %s17, 0
      %p44 = por %p42, %p43
      %s46 = sadd.s32 %s45, 1
      %p49 = scmp.eq.s32.totalorder %s11, 1
      %p50 = scmp.ne.s32.totalorder %s45, %s47
      %p51 = scmp.eq.s32.totalorder %s11, 0
      %p52 = por %p50, %p51
      %p53 = scmp.ne.s32.totalorder %s45, %s47
      %p54 = scmp.eq.s32.totalorder %s16, 1
      %p55 = por %p53, %p54
      %p56 = scmp.ne.s32.totalorder %s47, %s48
      %p57 = scmp.eq.s32.totalorder %s16, 0
      %p58 = por %p56, %p57
      %p59 = scmp.ne.s32.totalorder %s47, %s48
      %p60 = scmp.eq.s32.totalorder %s17, 1
      %p61 = por %p59, %p60
      %p63 = scmp.ne.s32.totalorder %s48, %s62
      %p64 = scmp.eq.s32.totalorder %s17, 0
      %p65 = por %p63, %p64
      %s66 = ssub.s32 %s11, %s18
      %p67 = scmp.eq.s32.totalorder %s66, 0
      %s69 = sadd.s32 %s68, 1
      %s70 = scalar_select %p67, %s68, %s69
      %p73 = pneg %p67
      %p74 = scmp.eq.s32.totalorder %s11, 1
      %p75 = por %p73, %p74
      %p76 = scmp.ne.s32.totalorder %s68, %s71
      %p77 = scmp.eq.s32.totalorder %s11, 0
      %p78 = por %p76, %p77
      %p79 = scmp.ne.s32.totalorder %s68, %s71
      %p80 = scmp.eq.s32.totalorder %s16, 1
      %p81 = por %p79, %p80
      %p82 = scmp.ne.s32.totalorder %s71, %s72
      %p83 = scmp.eq.s32.totalorder %s16, 0
      %p84 = por %p82, %p83
      %p85 = scmp.ne.s32.totalorder %s71, %s72
      %p86 = scmp.eq.s32.totalorder %s17, 1
      %p87 = por %p85, %p86
      %p89 = scmp.ne.s32.totalorder %s72, %s88
      %p90 = scmp.eq.s32.totalorder %s17, 0
      %p91 = por %p89, %p90
      %p92 = scmp.le.s32.totalorder 1, %s11
      %p93 = scmp.lt.s32.totalorder %s11, 3
      %p94 = pnand %p92, %p93
      %p95 = pneg %p94
      // Predicated region
      $region9: #{tpu_custom_call.1} parent=5 // pred_check
        _
      $region10: #{tpu_custom_call.1} parent=5 // pred_check_branch
        %97 = sbr.rel (%p94) target = $region12
      $region11: #{tpu_custom_call.1} parent=5 // pred_region
        %s98 = ssub.s32 %s11, 1
        // Predicated region
        $region13: #{tpu_custom_call.1} parent=11 // pred_check
          %p99 = pneg %p58
        $region14: #{tpu_custom_call.1} parent=11 // pred_check_branch
          %101 = sbr.rel (%p99) target = $region16
        $region15: #{tpu_custom_call.1} parent=11 // pred_region
          _
        $region16: #{tpu_custom_call.1} parent=11 // pred_fallthru
          _
      $region12: #{tpu_custom_call.1} parent=5 // pred_fallthru
        _
      %p102 = scmp.lt.s32.totalorder %s11, 2
      // Predicated region
      $region17: #{tpu_custom_call.1} parent=5 // pred_check
        %p103 = pneg %p102
      $region18: #{tpu_custom_call.1} parent=5 // pred_check_branch
        %105 = sbr.rel (%p103) target = $region20
      $region19: #{tpu_custom_call.1} parent=5 // pred_region
        // Predicated region
        $region21: #{tpu_custom_call.1} parent=19 // pred_check
          %p106 = pneg %p31
        $region22: #{tpu_custom_call.1} parent=19 // pred_check_branch
          %108 = sbr.rel (%p106) target = $region24
        $region23: #{tpu_custom_call.1} parent=19 // pred_region
          %p109 = scmp.lt.s32.totalorder %s11, 1
          %s110 = scalar_select %p109, %s11, 1
          %s111 = smul.addr %s110, 2
          %s112 = smul.addr %s111, 4
          %s113 = scalar_lea.vmem %s0, %s112
        $region24: #{tpu_custom_call.1} parent=19 // pred_fallthru
          _
      $region20: #{tpu_custom_call.1} parent=5 // pred_fallthru
        _
      %p114 = scmp.le.s32.totalorder 1, %s11
      %p115 = scmp.lt.s32.totalorder %s11, 3
      %p116 = pnand %p114, %p115
      %p117 = pneg %p116
      // Predicated region
      $region25: #{tpu_custom_call.1} parent=5 // pred_check
        _
      $region26: #{tpu_custom_call.1} parent=5 // pred_check_branch
        %119 = sbr.rel (%p116) target = $region28
      $region27: #{tpu_custom_call.1} parent=5 // pred_region
        %s120 = ssub.s32 %s11, 1
        %p121 = scmp.lt.s32.totalorder %s16, 1
        %s122 = scalar_select %p121, %s16, 1
        %s123 = smul.addr %s122, 2
        %s124 = smul.addr %s123, 4
        %s125 = scalar_lea.vmem %s0, %s124
        %p126 = pneg %p37
        %p127 = pneg %p34
        %p128 = pneg %p58
        %p129 = pneg %p55
        %p130 = pneg %p84
        %p131 = pneg %p81
        %s132 = sand.u32 %s71, 1
        %s133 = scalar_lea.sflag [#allocation3], %s132
        %s134 = sand.u32 %s71, 1
        %s135 = smul.addr %s134, 16
        %s136 = scalar_lea.vmem [#allocation2], %s135
        %p137 = scmp.lt.s32.totalorder %s16, 1
        %s138 = scalar_select %p137, %s16, 1
        %s139 = smul.addr %s138, 2
        %s140 = smul.addr %s139, 4
        %s141 = scalar_lea.vmem %s0, %s140
        %v142 = vld [vmem:[%s141] sm:$0x77]
        %v143 = vld [vmem:[%s1] sm:$0xff]
        %145 = vset.pattern.permute.xlu0 0
        %146 = vperm.xlu0 %145, %v143
        %v147 = vpop.permute.xlu0 %146
        %v150 = vlaneseq
        %v151 = vshrl.u32 %v150, 7
        %v152 = vsub.s32 0, %v151
        %v153 = vrot.slane %v142, %v152
        %v154 = vlaneseq
        %v155 = vshrl.u32 %v154, 7
        %v156 = vsub.s32 4, %v155
        %v157 = vrot.slane %v142, %v156
        %v160 = vlaneseq
        %v161 = vshrl.u32 %v160, 7
        %v162 = vsub.s32 0, %v161
        %v163 = vrot.slane %v153, %v162
        %v164 = vlaneseq
        %v165 = vshrl.u32 %v164, 7
        %v166 = vsub.s32 0, %v165
        %v167 = vrot.slane %v157, %v166
        %v168 = vmul.f32 %v147, %v163
        %v169 = vmul.f32 %v147, %v167
        %170 = vset.pattern.permute.xlu0 1
        %171 = vperm.xlu0 %170, %v143
        %v172 = vpop.permute.xlu0 %171
        %v174 = vlaneseq
        %v175 = vshrl.u32 %v174, 7
        %v176 = vsub.s32 1, %v175
        %v177 = vrot.slane %v142, %v176
        %v178 = vlaneseq
        %v179 = vshrl.u32 %v178, 7
        %v180 = vsub.s32 5, %v179
        %v181 = vrot.slane %v142, %v180
        %v184 = vlaneseq
        %v185 = vshrl.u32 %v184, 7
        %v186 = vsub.s32 1, %v185
        %v187 = vrot.slane %v177, %v186
        %v188 = vlaneseq
        %v189 = vshrl.u32 %v188, 7
        %v190 = vsub.s32 1, %v189
        %v191 = vrot.slane %v181, %v190
        %v192 = vmul.f32 %v172, %v187
        %v193 = vmul.f32 %v172, %v191
        %v194 = vadd.f32 %v168, %v192
        %v195 = vadd.f32 %v169, %v193
        %196 = vset.pattern.permute.xlu0 2
        %197 = vperm.xlu0 %196, %v143
        %v198 = vpop.permute.xlu0 %197
        %v200 = vlaneseq
        %v201 = vshrl.u32 %v200, 7
        %v202 = vsub.s32 2, %v201
        %v203 = vrot.slane %v142, %v202
        %v204 = vlaneseq
        %v205 = vshrl.u32 %v204, 7
        %v206 = vsub.s32 6, %v205
        %v207 = vrot.slane %v142, %v206
        %v210 = vlaneseq
        %v211 = vshrl.u32 %v210, 7
        %v212 = vsub.s32 2, %v211
        %v213 = vrot.slane %v203, %v212
        %v214 = vlaneseq
        %v215 = vshrl.u32 %v214, 7
        %v216 = vsub.s32 2, %v215
        %v217 = vrot.slane %v207, %v216
        %v218 = vmul.f32 %v198, %v213
        %v219 = vmul.f32 %v198, %v217
        %v220 = vadd.f32 %v194, %v218
        %v221 = vadd.f32 %v195, %v219
        %222 = vst [vmem:[%s136] sm:$0xff] %v220
        %223 = vst [vmem:[%s136 + $0x8] sm:$0xff] %v221
        %s224 = sand.u32 %s71, 1
        %s225 = scalar_lea.sflag [#allocation3], %s224
        %s226 = sand.u32 %s71, 1
        %s227 = smul.addr %s226, 16
        %s228 = scalar_lea.vmem [#allocation2], %s227
        // Predicated region
        $region29: #{tpu_custom_call.1} parent=27 // pred_check
          %p229 = pneg %p81
        $region30: #{tpu_custom_call.1} parent=27 // pred_check_branch
          %231 = sbr.rel (%p229) target = $region32
        $region31: #{tpu_custom_call.1} parent=27 // pred_region
          %s233 = ssub.s32 256, 256
          %234 = vsyncadd %s225, %s233
          %s235 = smul.addr %s16, 2
          %s236 = smul.addr %s235, 128
          %s237 = scalar_lea.hbm %s2, %s236
          %s239 = sshll.u32 %s228, 4
          %s240 = int_to_ptr.vmem [resolvable:$true] %s239
          %242 = dma.vmem_to_hbm [thread:$0]  %s240, 256, %s237, %s225
        $region32: #{tpu_custom_call.1} parent=27 // pred_fallthru
          _
      $region28: #{tpu_custom_call.1} parent=5 // pred_fallthru
        _
      %p243 = scmp.le.s32.totalorder 2, %s11
      // Predicated region
      $region33: #{tpu_custom_call.1} parent=5 // pred_check
        %p244 = pneg %p243
      $region34: #{tpu_custom_call.1} parent=5 // pred_check_branch
        %246 = sbr.rel (%p244) target = $region36
      $region35: #{tpu_custom_call.1} parent=5 // pred_region
        %s247 = ssub.s32 %s11, 2
        // Predicated region
        $region37: #{tpu_custom_call.1} parent=35 // pred_check
          %p248 = pneg %p87
        $region38: #{tpu_custom_call.1} parent=35 // pred_check_branch
          %250 = sbr.rel (%p248) target = $region40
        $region39: #{tpu_custom_call.1} parent=35 // pred_region
          %s251 = sand.u32 %s72, 1
          %s252 = scalar_lea.sflag [#allocation3], %s251
          %s253 = sand.u32 %s72, 1
          %s254 = smul.addr %s253, 16
          %s255 = scalar_lea.vmem [#allocation2], %s254
          %256 = dma.done %s252, 256
        $region40: #{tpu_custom_call.1} parent=35 // pred_fallthru
          _
      $region36: #{tpu_custom_call.1} parent=5 // pred_fallthru
        _
    $region6: #{tpu_custom_call.1} parent=1 // loop_footer
      %s15 = sadd.s32 1, %s11
    $region7: #{tpu_custom_call.1} parent=1 // loop_footer_branch
      %10 = sbr.rel target = $region3
    $region8: #{tpu_custom_call.1} parent=1 // loop_exit
      _
    %257 = vsyncpa [#allocation3], 1
    %s258 = scalar_lea.sflag [#allocation3], 1
    %259 = vsyncpa %s258, 1

</llo_original>
